<compile_context>
chip_gen: v5e
topology: v5e:2x2
jax: 0.10.0
libtpu: 0.0.40
codegen_flags: <defaults>
</compile_context>

<pallas_src>
import functools

import jax
import jax.numpy as jnp
from jax.experimental import pallas as pl
from jax.experimental.pallas import tpu as pltpu

INPUT_DIM = 28
LATENT_DIM = 128
HIDDEN = 128
OUT_PAD = 128          # lane-dense padded output width (sliced to 28 in wrapper)
MAX_TILE_B = 256       # batch tile (full MXU rows on v6e/v7x; 2x128 on v5e)

# (in, out) for each of the 10 Linear layers, in forward order.
LAYER_DIMS = (
    # encoder
    (INPUT_DIM, HIDDEN),
    (HIDDEN, HIDDEN),
    (HIDDEN, HIDDEN),
    (HIDDEN, HIDDEN),
    (HIDDEN, LATENT_DIM),
    # decoder
    (LATENT_DIM, HIDDEN),
    (HIDDEN, HIDDEN),
    (HIDDEN, HIDDEN),
    (HIDDEN, HIDDEN),
    (HIDDEN, INPUT_DIM),
)
NUM_LAYERS = len(LAYER_DIMS)


def _round_up(x, m):
    return ((x + m - 1) // m) * m


def autoencoder_kernel(*refs):
    """refs = (x_ref, w0..w9, b0..b9, out_ref); weights bf16, activations f32."""
    x_ref = refs[0]
    w_refs = refs[1:1 + NUM_LAYERS]
    b_refs = refs[1 + NUM_LAYERS:1 + 2 * NUM_LAYERS]
    out_ref = refs[1 + 2 * NUM_LAYERS]

    def linear(h_f32, i):
        # bf16 operands into the MXU, f32 accumulation, f32 bias add on the VPU.
        return (
            jnp.dot(h_f32.astype(jnp.bfloat16), w_refs[i][...],
                    preferred_element_type=jnp.float32)
            + b_refs[i][...]
        )

    h = x_ref[...]  # f32 (TILE_B, INPUT_DIM)

    # ---- encoder: 4x (Linear -> ReLU), then latent Linear (no activation) ----
    for i in range(4):
        h = jnp.maximum(linear(h, i), 0.0)
    h = linear(h, 4)

    # ---- decoder: 4x (Linear -> ReLU), then Linear -> Sigmoid ----
    for i in range(5, 9):
        h = jnp.maximum(linear(h, i), 0.0)
    h = linear(h, 9)                       # (TILE_B, OUT_PAD), lane-dense

    out_ref[...] = jax.nn.sigmoid(h).astype(out_ref.dtype)


@functools.partial(jax.jit, static_argnames=("tile_b",))
def autoencoder_forward(x, weights, biases, *, tile_b=MAX_TILE_B):
    batch = x.shape[0]
    # Batch tile: multiple of 8 sublanes, capped at MAX_TILE_B.
    tile_b = min(tile_b, _round_up(max(batch, 8), 8))
    padded_batch = _round_up(batch, tile_b)
    if padded_batch != batch:
        x = jnp.pad(x, ((0, padded_batch - batch), (0, 0)))
    grid = (padded_batch // tile_b,)

    const_map = lambda i: (0, 0)  # weights/biases: one block, resident across grid
    in_specs = [pl.BlockSpec((tile_b, INPUT_DIM), lambda i: (i, 0))]
    in_specs += [pl.BlockSpec(w.shape, const_map) for w in weights]
    in_specs += [pl.BlockSpec(b.shape, const_map) for b in biases]
    out_spec = pl.BlockSpec((tile_b, OUT_PAD), lambda i: (i, 0))

    out = pl.pallas_call(
        autoencoder_kernel,
        out_shape=jax.ShapeDtypeStruct((padded_batch, OUT_PAD), jnp.float32),
        grid_spec=pltpu.PrefetchScalarGridSpec(
            num_scalar_prefetch=0,
            grid=grid,
            in_specs=in_specs,
            out_specs=out_spec,
        ),
        compiler_params=pltpu.CompilerParams(
            dimension_semantics=("parallel",),      # megacore on v7x
            vmem_limit_bytes=32 * 1024 * 1024,      # well within v7x's 64 MiB too
        ),
    )(x, *weights, *biases)

    return out[:batch, :INPUT_DIM]


def init_params(key):
    """PyTorch-Linear-style init (uniform +-1/sqrt(fan_in)); bf16 weights, f32 biases.

    The final layer is zero-padded from 28 to OUT_PAD output columns so the
    kernel's last store is lane-dense; the wrapper slices the result back.
    """
    weights, biases = [], []
    for li, (fan_in, fan_out) in enumerate(LAYER_DIMS):
        key, kw, kb = jax.random.split(key, 3)
        bound = 1.0 / jnp.sqrt(fan_in)
        w = jax.random.uniform(kw, (fan_in, fan_out), jnp.float32, -bound, bound)
        b = jax.random.uniform(kb, (1, fan_out), jnp.float32, -bound, bound)
        if li == NUM_LAYERS - 1 and fan_out < OUT_PAD:
            w = jnp.pad(w, ((0, 0), (0, OUT_PAD - fan_out)))
            b = jnp.pad(b, ((0, 0), (0, OUT_PAD - fan_out)))
        weights.append(w.astype(jnp.bfloat16))
        biases.append(b)  # keep f32
    return weights, biases


def reference_forward(x, weights, biases):
    """Pure-JAX reference of the same forward pass (bf16 matmuls, f32 accumulate)."""
    def linear(h, i):
        return jnp.dot(h.astype(jnp.bfloat16), weights[i],
                       preferred_element_type=jnp.float32) + biases[i]

    h = x
    for i in range(4):
        h = jnp.maximum(linear(h, i), 0.0)
    h = linear(h, 4)
    for i in range(5, 9):
        h = jnp.maximum(linear(h, i), 0.0)
    h = linear(h, 9)
    return jax.nn.sigmoid(h)[:, :INPUT_DIM]


if __name__ == "__main__":
    key = jax.random.PRNGKey(0)
    key, kx1, kx2 = jax.random.split(key, 3)
    weights, biases = init_params(key)

    # Small correctness check (single grid step).
    x_small = jax.random.uniform(kx1, (8, INPUT_DIM), jnp.float32)
    out_small = jax.block_until_ready(autoencoder_forward(x_small, weights, biases))
    ref_small = reference_forward(x_small, weights, biases)
    assert out_small.shape == (8, INPUT_DIM)
    assert jnp.allclose(out_small, ref_small, atol=2e-3, rtol=2e-3), \
        "mismatch vs JAX reference (small batch)"

    # Larger batch: exercises the batch grid (2 steps of 256), padding (300->512),
    # resident weights, and the parallel dimension on megacore chips.
    x_big = jax.random.uniform(kx2, (300, INPUT_DIM), jnp.float32)
    out_big = jax.block_until_ready(autoencoder_forward(x_big, weights, biases))
    ref_big = reference_forward(x_big, weights, biases)
    assert out_big.shape == (300, INPUT_DIM)
    assert jnp.allclose(out_big, ref_big, atol=2e-3, rtol=2e-3), \
        "mismatch vs JAX reference (large batch)"

    print("KERNEL_OK")
</pallas_src>

<mosaic_0001>
module attributes {stable_mosaic.version = 11 : i64} {
  func.func @autoencoder_kernel(%arg0: i32, %arg1: memref<8x28xf32, #tpu.memory_space<vmem>>, %arg2: memref<28x128xbf16, #tpu.memory_space<vmem>>, %arg3: memref<128x128xbf16, #tpu.memory_space<vmem>>, %arg4: memref<128x128xbf16, #tpu.memory_space<vmem>>, %arg5: memref<128x128xbf16, #tpu.memory_space<vmem>>, %arg6: memref<128x128xbf16, #tpu.memory_space<vmem>>, %arg7: memref<128x128xbf16, #tpu.memory_space<vmem>>, %arg8: memref<128x128xbf16, #tpu.memory_space<vmem>>, %arg9: memref<128x128xbf16, #tpu.memory_space<vmem>>, %arg10: memref<128x128xbf16, #tpu.memory_space<vmem>>, %arg11: memref<128x128xbf16, #tpu.memory_space<vmem>>, %arg12: memref<1x128xf32, #tpu.memory_space<vmem>>, %arg13: memref<1x128xf32, #tpu.memory_space<vmem>>, %arg14: memref<1x128xf32, #tpu.memory_space<vmem>>, %arg15: memref<1x128xf32, #tpu.memory_space<vmem>>, %arg16: memref<1x128xf32, #tpu.memory_space<vmem>>, %arg17: memref<1x128xf32, #tpu.memory_space<vmem>>, %arg18: memref<1x128xf32, #tpu.memory_space<vmem>>, %arg19: memref<1x128xf32, #tpu.memory_space<vmem>>, %arg20: memref<1x128xf32, #tpu.memory_space<vmem>>, %arg21: memref<1x128xf32, #tpu.memory_space<vmem>>, %arg22: memref<8x128xf32, #tpu.memory_space<vmem>>) attributes {dimension_semantics = [#tpu.dimension_semantics<parallel>], iteration_bounds = array<i64: 1>, scalar_prefetch = 0 : i64, scratch_operands = 0 : i64, tpu.core_type = #tpu.core_type<tc>, window_params = [{transform_indices = @transform_0, window_bounds = array<i64: 8, 28>}, {pipeline_mode = #tpu.pipeline_mode<synchronous>, transform_indices = @transform_1, window_bounds = array<i64: 28, 128>}, {pipeline_mode = #tpu.pipeline_mode<synchronous>, transform_indices = @transform_2, window_bounds = array<i64: 128, 128>}, {pipeline_mode = #tpu.pipeline_mode<synchronous>, transform_indices = @transform_3, window_bounds = array<i64: 128, 128>}, {pipeline_mode = #tpu.pipeline_mode<synchronous>, transform_indices = @transform_4, window_bounds = array<i64: 128, 128>}, {pipeline_mode = #tpu.pipeline_mode<synchronous>, transform_indices = @transform_5, window_bounds = array<i64: 128, 128>}, {pipeline_mode = #tpu.pipeline_mode<synchronous>, transform_indices = @transform_6, window_bounds = array<i64: 128, 128>}, {pipeline_mode = #tpu.pipeline_mode<synchronous>, transform_indices = @transform_7, window_bounds = array<i64: 128, 128>}, {pipeline_mode = #tpu.pipeline_mode<synchronous>, transform_indices = @transform_8, window_bounds = array<i64: 128, 128>}, {pipeline_mode = #tpu.pipeline_mode<synchronous>, transform_indices = @transform_9, window_bounds = array<i64: 128, 128>}, {pipeline_mode = #tpu.pipeline_mode<synchronous>, transform_indices = @transform_10, window_bounds = array<i64: 128, 128>}, {pipeline_mode = #tpu.pipeline_mode<synchronous>, transform_indices = @transform_11, window_bounds = array<i64: 1, 128>}, {pipeline_mode = #tpu.pipeline_mode<synchronous>, transform_indices = @transform_12, window_bounds = array<i64: 1, 128>}, {pipeline_mode = #tpu.pipeline_mode<synchronous>, transform_indices = @transform_13, window_bounds = array<i64: 1, 128>}, {pipeline_mode = #tpu.pipeline_mode<synchronous>, transform_indices = @transform_14, window_bounds = array<i64: 1, 128>}, {pipeline_mode = #tpu.pipeline_mode<synchronous>, transform_indices = @transform_15, window_bounds = array<i64: 1, 128>}, {pipeline_mode = #tpu.pipeline_mode<synchronous>, transform_indices = @transform_16, window_bounds = array<i64: 1, 128>}, {pipeline_mode = #tpu.pipeline_mode<synchronous>, transform_indices = @transform_17, window_bounds = array<i64: 1, 128>}, {pipeline_mode = #tpu.pipeline_mode<synchronous>, transform_indices = @transform_18, window_bounds = array<i64: 1, 128>}, {pipeline_mode = #tpu.pipeline_mode<synchronous>, transform_indices = @transform_19, window_bounds = array<i64: 1, 128>}, {pipeline_mode = #tpu.pipeline_mode<synchronous>, transform_indices = @transform_20, window_bounds = array<i64: 1, 128>}, {transform_indices = @transform_21, window_bounds = array<i64: 8, 128>}]} {
    %c0 = arith.constant 0 : index
    %c0_0 = arith.constant 0 : index
    %0 = vector.load %arg1[%c0, %c0_0] : memref<8x28xf32, #tpu.memory_space<vmem>>, vector<8x28xf32>
    %1 = arith.truncf %0 : vector<8x28xf32> to vector<8x28xbf16>
    %c0_1 = arith.constant 0 : index
    %c0_2 = arith.constant 0 : index
    %2 = vector.load %arg2[%c0_1, %c0_2] : memref<28x128xbf16, #tpu.memory_space<vmem>>, vector<28x128xbf16>
    %cst = arith.constant dense<0.000000e+00> : vector<8x128xf32>
    %3 = tpu.matmul %1, %2, %cst {dimension_numbers = #tpu.dot_dimension_numbers<[1], [0], [0], [1], [0, 0, 1, 1], [], []>} : vector<8x28xbf16>, vector<28x128xbf16>, vector<8x128xf32> -> vector<8x128xf32>
    %c0_3 = arith.constant 0 : index
    %c0_4 = arith.constant 0 : index
    %4 = vector.load %arg12[%c0_3, %c0_4] : memref<1x128xf32, #tpu.memory_space<vmem>>, vector<1x128xf32>
    %5 = vector.broadcast %4 : vector<1x128xf32> to vector<8x128xf32>
    %6 = arith.addf %3, %5 : vector<8x128xf32>
    %cst_5 = arith.constant 0.000000e+00 : f32
    %7 = vector.broadcast %cst_5 : f32 to vector<8x128xf32>
    %8 = arith.maximumf %6, %7 : vector<8x128xf32>
    %9 = arith.truncf %8 : vector<8x128xf32> to vector<8x128xbf16>
    %c0_6 = arith.constant 0 : index
    %c0_7 = arith.constant 0 : index
    %10 = vector.load %arg3[%c0_6, %c0_7] : memref<128x128xbf16, #tpu.memory_space<vmem>>, vector<128x128xbf16>
    %cst_8 = arith.constant dense<0.000000e+00> : vector<8x128xf32>
    %11 = tpu.matmul %9, %10, %cst_8 {dimension_numbers = #tpu.dot_dimension_numbers<[1], [0], [0], [1], [0, 0, 1, 1], [], []>} : vector<8x128xbf16>, vector<128x128xbf16>, vector<8x128xf32> -> vector<8x128xf32>
    %c0_9 = arith.constant 0 : index
    %c0_10 = arith.constant 0 : index
    %12 = vector.load %arg13[%c0_9, %c0_10] : memref<1x128xf32, #tpu.memory_space<vmem>>, vector<1x128xf32>
    %13 = vector.broadcast %12 : vector<1x128xf32> to vector<8x128xf32>
    %14 = arith.addf %11, %13 : vector<8x128xf32>
    %cst_11 = arith.constant 0.000000e+00 : f32
    %15 = vector.broadcast %cst_11 : f32 to vector<8x128xf32>
    %16 = arith.maximumf %14, %15 : vector<8x128xf32>
    %17 = arith.truncf %16 : vector<8x128xf32> to vector<8x128xbf16>
    %c0_12 = arith.constant 0 : index
    %c0_13 = arith.constant 0 : index
    %18 = vector.load %arg4[%c0_12, %c0_13] : memref<128x128xbf16, #tpu.memory_space<vmem>>, vector<128x128xbf16>
    %cst_14 = arith.constant dense<0.000000e+00> : vector<8x128xf32>
    %19 = tpu.matmul %17, %18, %cst_14 {dimension_numbers = #tpu.dot_dimension_numbers<[1], [0], [0], [1], [0, 0, 1, 1], [], []>} : vector<8x128xbf16>, vector<128x128xbf16>, vector<8x128xf32> -> vector<8x128xf32>
    %c0_15 = arith.constant 0 : index
    %c0_16 = arith.constant 0 : index
    %20 = vector.load %arg14[%c0_15, %c0_16] : memref<1x128xf32, #tpu.memory_space<vmem>>, vector<1x128xf32>
    %21 = vector.broadcast %20 : vector<1x128xf32> to vector<8x128xf32>
    %22 = arith.addf %19, %21 : vector<8x128xf32>
    %cst_17 = arith.constant 0.000000e+00 : f32
    %23 = vector.broadcast %cst_17 : f32 to vector<8x128xf32>
    %24 = arith.maximumf %22, %23 : vector<8x128xf32>
    %25 = arith.truncf %24 : vector<8x128xf32> to vector<8x128xbf16>
    %c0_18 = arith.constant 0 : index
    %c0_19 = arith.constant 0 : index
    %26 = vector.load %arg5[%c0_18, %c0_19] : memref<128x128xbf16, #tpu.memory_space<vmem>>, vector<128x128xbf16>
    %cst_20 = arith.constant dense<0.000000e+00> : vector<8x128xf32>
    %27 = tpu.matmul %25, %26, %cst_20 {dimension_numbers = #tpu.dot_dimension_numbers<[1], [0], [0], [1], [0, 0, 1, 1], [], []>} : vector<8x128xbf16>, vector<128x128xbf16>, vector<8x128xf32> -> vector<8x128xf32>
    %c0_21 = arith.constant 0 : index
    %c0_22 = arith.constant 0 : index
    %28 = vector.load %arg15[%c0_21, %c0_22] : memref<1x128xf32, #tpu.memory_space<vmem>>, vector<1x128xf32>
    %29 = vector.broadcast %28 : vector<1x128xf32> to vector<8x128xf32>
    %30 = arith.addf %27, %29 : vector<8x128xf32>
    %cst_23 = arith.constant 0.000000e+00 : f32
    %31 = vector.broadcast %cst_23 : f32 to vector<8x128xf32>
    %32 = arith.maximumf %30, %31 : vector<8x128xf32>
    %33 = arith.truncf %32 : vector<8x128xf32> to vector<8x128xbf16>
    %c0_24 = arith.constant 0 : index
    %c0_25 = arith.constant 0 : index
    %34 = vector.load %arg6[%c0_24, %c0_25] : memref<128x128xbf16, #tpu.memory_space<vmem>>, vector<128x128xbf16>
    %cst_26 = arith.constant dense<0.000000e+00> : vector<8x128xf32>
    %35 = tpu.matmul %33, %34, %cst_26 {dimension_numbers = #tpu.dot_dimension_numbers<[1], [0], [0], [1], [0, 0, 1, 1], [], []>} : vector<8x128xbf16>, vector<128x128xbf16>, vector<8x128xf32> -> vector<8x128xf32>
    %c0_27 = arith.constant 0 : index
    %c0_28 = arith.constant 0 : index
    %36 = vector.load %arg16[%c0_27, %c0_28] : memref<1x128xf32, #tpu.memory_space<vmem>>, vector<1x128xf32>
    %37 = vector.broadcast %36 : vector<1x128xf32> to vector<8x128xf32>
    %38 = arith.addf %35, %37 : vector<8x128xf32>
    %39 = arith.truncf %38 : vector<8x128xf32> to vector<8x128xbf16>
    %c0_29 = arith.constant 0 : index
    %c0_30 = arith.constant 0 : index
    %40 = vector.load %arg7[%c0_29, %c0_30] : memref<128x128xbf16, #tpu.memory_space<vmem>>, vector<128x128xbf16>
    %cst_31 = arith.constant dense<0.000000e+00> : vector<8x128xf32>
    %41 = tpu.matmul %39, %40, %cst_31 {dimension_numbers = #tpu.dot_dimension_numbers<[1], [0], [0], [1], [0, 0, 1, 1], [], []>} : vector<8x128xbf16>, vector<128x128xbf16>, vector<8x128xf32> -> vector<8x128xf32>
    %c0_32 = arith.constant 0 : index
    %c0_33 = arith.constant 0 : index
    %42 = vector.load %arg17[%c0_32, %c0_33] : memref<1x128xf32, #tpu.memory_space<vmem>>, vector<1x128xf32>
    %43 = vector.broadcast %42 : vector<1x128xf32> to vector<8x128xf32>
    %44 = arith.addf %41, %43 : vector<8x128xf32>
    %cst_34 = arith.constant 0.000000e+00 : f32
    %45 = vector.broadcast %cst_34 : f32 to vector<8x128xf32>
    %46 = arith.maximumf %44, %45 : vector<8x128xf32>
    %47 = arith.truncf %46 : vector<8x128xf32> to vector<8x128xbf16>
    %c0_35 = arith.constant 0 : index
    %c0_36 = arith.constant 0 : index
    %48 = vector.load %arg8[%c0_35, %c0_36] : memref<128x128xbf16, #tpu.memory_space<vmem>>, vector<128x128xbf16>
    %cst_37 = arith.constant dense<0.000000e+00> : vector<8x128xf32>
    %49 = tpu.matmul %47, %48, %cst_37 {dimension_numbers = #tpu.dot_dimension_numbers<[1], [0], [0], [1], [0, 0, 1, 1], [], []>} : vector<8x128xbf16>, vector<128x128xbf16>, vector<8x128xf32> -> vector<8x128xf32>
    %c0_38 = arith.constant 0 : index
    %c0_39 = arith.constant 0 : index
    %50 = vector.load %arg18[%c0_38, %c0_39] : memref<1x128xf32, #tpu.memory_space<vmem>>, vector<1x128xf32>
    %51 = vector.broadcast %50 : vector<1x128xf32> to vector<8x128xf32>
    %52 = arith.addf %49, %51 : vector<8x128xf32>
    %cst_40 = arith.constant 0.000000e+00 : f32
    %53 = vector.broadcast %cst_40 : f32 to vector<8x128xf32>
    %54 = arith.maximumf %52, %53 : vector<8x128xf32>
    %55 = arith.truncf %54 : vector<8x128xf32> to vector<8x128xbf16>
    %c0_41 = arith.constant 0 : index
    %c0_42 = arith.constant 0 : index
    %56 = vector.load %arg9[%c0_41, %c0_42] : memref<128x128xbf16, #tpu.memory_space<vmem>>, vector<128x128xbf16>
    %cst_43 = arith.constant dense<0.000000e+00> : vector<8x128xf32>
    %57 = tpu.matmul %55, %56, %cst_43 {dimension_numbers = #tpu.dot_dimension_numbers<[1], [0], [0], [1], [0, 0, 1, 1], [], []>} : vector<8x128xbf16>, vector<128x128xbf16>, vector<8x128xf32> -> vector<8x128xf32>
    %c0_44 = arith.constant 0 : index
    %c0_45 = arith.constant 0 : index
    %58 = vector.load %arg19[%c0_44, %c0_45] : memref<1x128xf32, #tpu.memory_space<vmem>>, vector<1x128xf32>
    %59 = vector.broadcast %58 : vector<1x128xf32> to vector<8x128xf32>
    %60 = arith.addf %57, %59 : vector<8x128xf32>
    %cst_46 = arith.constant 0.000000e+00 : f32
    %61 = vector.broadcast %cst_46 : f32 to vector<8x128xf32>
    %62 = arith.maximumf %60, %61 : vector<8x128xf32>
    %63 = arith.truncf %62 : vector<8x128xf32> to vector<8x128xbf16>
    %c0_47 = arith.constant 0 : index
    %c0_48 = arith.constant 0 : index
    %64 = vector.load %arg10[%c0_47, %c0_48] : memref<128x128xbf16, #tpu.memory_space<vmem>>, vector<128x128xbf16>
    %cst_49 = arith.constant dense<0.000000e+00> : vector<8x128xf32>
    %65 = tpu.matmul %63, %64, %cst_49 {dimension_numbers = #tpu.dot_dimension_numbers<[1], [0], [0], [1], [0, 0, 1, 1], [], []>} : vector<8x128xbf16>, vector<128x128xbf16>, vector<8x128xf32> -> vector<8x128xf32>
    %c0_50 = arith.constant 0 : index
    %c0_51 = arith.constant 0 : index
    %66 = vector.load %arg20[%c0_50, %c0_51] : memref<1x128xf32, #tpu.memory_space<vmem>>, vector<1x128xf32>
    %67 = vector.broadcast %66 : vector<1x128xf32> to vector<8x128xf32>
    %68 = arith.addf %65, %67 : vector<8x128xf32>
    %cst_52 = arith.constant 0.000000e+00 : f32
    %69 = vector.broadcast %cst_52 : f32 to vector<8x128xf32>
    %70 = arith.maximumf %68, %69 : vector<8x128xf32>
    %71 = arith.truncf %70 : vector<8x128xf32> to vector<8x128xbf16>
    %c0_53 = arith.constant 0 : index
    %c0_54 = arith.constant 0 : index
    %72 = vector.load %arg11[%c0_53, %c0_54] : memref<128x128xbf16, #tpu.memory_space<vmem>>, vector<128x128xbf16>
    %cst_55 = arith.constant dense<0.000000e+00> : vector<8x128xf32>
    %73 = tpu.matmul %71, %72, %cst_55 {dimension_numbers = #tpu.dot_dimension_numbers<[1], [0], [0], [1], [0, 0, 1, 1], [], []>} : vector<8x128xbf16>, vector<128x128xbf16>, vector<8x128xf32> -> vector<8x128xf32>
    %c0_56 = arith.constant 0 : index
    %c0_57 = arith.constant 0 : index
    %74 = vector.load %arg21[%c0_56, %c0_57] : memref<1x128xf32, #tpu.memory_space<vmem>>, vector<1x128xf32>
    %75 = vector.broadcast %74 : vector<1x128xf32> to vector<8x128xf32>
    %76 = arith.addf %73, %75 : vector<8x128xf32>
    %77 = arith.negf %76 : vector<8x128xf32>
    %78 = math.exp %77 : vector<8x128xf32>
    %cst_58 = arith.constant 1.000000e+00 : f32
    %79 = vector.broadcast %cst_58 : f32 to vector<8x128xf32>
    %80 = arith.addf %79, %78 : vector<8x128xf32>
    %81 = arith.divf %79, %80 : vector<8x128xf32>
    %c0_59 = arith.constant 0 : index
    %c0_60 = arith.constant 0 : index
    %82 = vector.load %arg22[%c0_59, %c0_60] : memref<8x128xf32, #tpu.memory_space<vmem>>, vector<8x128xf32>
    tpu.vector_store %arg22[%c0_59, %c0_60], %81 {strides = array<i32>} : memref<8x128xf32, #tpu.memory_space<vmem>>, vector<8x128xf32>,
    return
  }
  func.func @transform_0(%arg0: i32) -> (i32, i32) {
    %c0_i32 = arith.constant 0 : i32
    %c0_i32_0 = arith.constant 0 : i32
    return %arg0, %c0_i32 : i32, i32
  }
  func.func @transform_1(%arg0: i32) -> (i32, i32) {
    %c0_i32 = arith.constant 0 : i32
    %c0_i32_0 = arith.constant 0 : i32
    %c0_i32_1 = arith.constant 0 : i32
    return %c0_i32, %c0_i32_0 : i32, i32
  }
  func.func @transform_2(%arg0: i32) -> (i32, i32) {
    %c0_i32 = arith.constant 0 : i32
    %c0_i32_0 = arith.constant 0 : i32
    %c0_i32_1 = arith.constant 0 : i32
    return %c0_i32, %c0_i32_0 : i32, i32
  }
  func.func @transform_3(%arg0: i32) -> (i32, i32) {
    %c0_i32 = arith.constant 0 : i32
    %c0_i32_0 = arith.constant 0 : i32
    %c0_i32_1 = arith.constant 0 : i32
    return %c0_i32, %c0_i32_0 : i32, i32
  }
  func.func @transform_4(%arg0: i32) -> (i32, i32) {
    %c0_i32 = arith.constant 0 : i32
    %c0_i32_0 = arith.constant 0 : i32
    %c0_i32_1 = arith.constant 0 : i32
    return %c0_i32, %c0_i32_0 : i32, i32
  }
  func.func @transform_5(%arg0: i32) -> (i32, i32) {
    %c0_i32 = arith.constant 0 : i32
    %c0_i32_0 = arith.constant 0 : i32
    %c0_i32_1 = arith.constant 0 : i32
    return %c0_i32, %c0_i32_0 : i32, i32
  }
  func.func @transform_6(%arg0: i32) -> (i32, i32) {
    %c0_i32 = arith.constant 0 : i32
    %c0_i32_0 = arith.constant 0 : i32
    %c0_i32_1 = arith.constant 0 : i32
    return %c0_i32, %c0_i32_0 : i32, i32
  }
  func.func @transform_7(%arg0: i32) -> (i32, i32) {
    %c0_i32 = arith.constant 0 : i32
    %c0_i32_0 = arith.constant 0 : i32
    %c0_i32_1 = arith.constant 0 : i32
    return %c0_i32, %c0_i32_0 : i32, i32
  }
  func.func @transform_8(%arg0: i32) -> (i32, i32) {
    %c0_i32 = arith.constant 0 : i32
    %c0_i32_0 = arith.constant 0 : i32
    %c0_i32_1 = arith.constant 0 : i32
    return %c0_i32, %c0_i32_0 : i32, i32
  }
  func.func @transform_9(%arg0: i32) -> (i32, i32) {
    %c0_i32 = arith.constant 0 : i32
    %c0_i32_0 = arith.constant 0 : i32
    %c0_i32_1 = arith.constant 0 : i32
    return %c0_i32, %c0_i32_0 : i32, i32
  }
  func.func @transform_10(%arg0: i32) -> (i32, i32) {
    %c0_i32 = arith.constant 0 : i32
    %c0_i32_0 = arith.constant 0 : i32
    %c0_i32_1 = arith.constant 0 : i32
    return %c0_i32, %c0_i32_0 : i32, i32
  }
  func.func @transform_11(%arg0: i32) -> (i32, i32) {
    %c0_i32 = arith.constant 0 : i32
    %c0_i32_0 = arith.constant 0 : i32
    %c0_i32_1 = arith.constant 0 : i32
    return %c0_i32, %c0_i32_0 : i32, i32
  }
  func.func @transform_12(%arg0: i32) -> (i32, i32) {
    %c0_i32 = arith.constant 0 : i32
    %c0_i32_0 = arith.constant 0 : i32
    %c0_i32_1 = arith.constant 0 : i32
    return %c0_i32, %c0_i32_0 : i32, i32
  }
  func.func @transform_13(%arg0: i32) -> (i32, i32) {
    %c0_i32 = arith.constant 0 : i32
    %c0_i32_0 = arith.constant 0 : i32
    %c0_i32_1 = arith.constant 0 : i32
    return %c0_i32, %c0_i32_0 : i32, i32
  }
  func.func @transform_14(%arg0: i32) -> (i32, i32) {
    %c0_i32 = arith.constant 0 : i32
    %c0_i32_0 = arith.constant 0 : i32
    %c0_i32_1 = arith.constant 0 : i32
    return %c0_i32, %c0_i32_0 : i32, i32
  }
  func.func @transform_15(%arg0: i32) -> (i32, i32) {
    %c0_i32 = arith.constant 0 : i32
    %c0_i32_0 = arith.constant 0 : i32
    %c0_i32_1 = arith.constant 0 : i32
    return %c0_i32, %c0_i32_0 : i32, i32
  }
  func.func @transform_16(%arg0: i32) -> (i32, i32) {
    %c0_i32 = arith.constant 0 : i32
    %c0_i32_0 = arith.constant 0 : i32
    %c0_i32_1 = arith.constant 0 : i32
    return %c0_i32, %c0_i32_0 : i32, i32
  }
  func.func @transform_17(%arg0: i32) -> (i32, i32) {
    %c0_i32 = arith.constant 0 : i32
    %c0_i32_0 = arith.constant 0 : i32
    %c0_i32_1 = arith.constant 0 : i32
    return %c0_i32, %c0_i32_0 : i32, i32
  }
  func.func @transform_18(%arg0: i32) -> (i32, i32) {
    %c0_i32 = arith.constant 0 : i32
    %c0_i32_0 = arith.constant 0 : i32
    %c0_i32_1 = arith.constant 0 : i32
    return %c0_i32, %c0_i32_0 : i32, i32
  }
  func.func @transform_19(%arg0: i32) -> (i32, i32) {
    %c0_i32 = arith.constant 0 : i32
    %c0_i32_0 = arith.constant 0 : i32
    %c0_i32_1 = arith.constant 0 : i32
    return %c0_i32, %c0_i32_0 : i32, i32
  }
  func.func @transform_20(%arg0: i32) -> (i32, i32) {
    %c0_i32 = arith.constant 0 : i32
    %c0_i32_0 = arith.constant 0 : i32
    %c0_i32_1 = arith.constant 0 : i32
    return %c0_i32, %c0_i32_0 : i32, i32
  }
  func.func @transform_21(%arg0: i32) -> (i32, i32) {
    %c0_i32 = arith.constant 0 : i32
    %c0_i32_0 = arith.constant 0 : i32
    return %arg0, %c0_i32 : i32, i32
  }
}

</mosaic_0001>

<llo_original>
// kernel: autoencoder_forward.1
$region0: #{autoencoder_forward.1}
  #allocation0 [shape = 'u32[]', space=smem, size = 0x4, offset = 0x4, fixed_abs, tag = 'smem constant byte address 0x4 - core index']
  #allocation1 [shape = 'u32[72,128]{1,0:T(1,128)}', space=vmem, size = 0x9000, scoped, tag = 'internal scratch']
  %s0 = inlined_call_operand.hbm [shape: f32[8,28], index: 0, kind: input, shape index: {}]
  %s1 = inlined_call_operand.hbm [shape: bf16[28,128], index: 1, kind: input, shape index: {}]
  %s2 = inlined_call_operand.hbm [shape: bf16[128,128], index: 2, kind: input, shape index: {}]
  %s3 = inlined_call_operand.hbm [shape: bf16[128,128], index: 3, kind: input, shape index: {}]
  %s4 = inlined_call_operand.hbm [shape: bf16[128,128], index: 4, kind: input, shape index: {}]
  %s5 = inlined_call_operand.hbm [shape: bf16[128,128], index: 5, kind: input, shape index: {}]
  %s6 = inlined_call_operand.hbm [shape: bf16[128,128], index: 6, kind: input, shape index: {}]
  %s7 = inlined_call_operand.hbm [shape: bf16[128,128], index: 7, kind: input, shape index: {}]
  %s8 = inlined_call_operand.hbm [shape: bf16[128,128], index: 8, kind: input, shape index: {}]
  %s9 = inlined_call_operand.hbm [shape: bf16[128,128], index: 9, kind: input, shape index: {}]
  %s10 = inlined_call_operand.hbm [shape: bf16[128,128], index: 10, kind: input, shape index: {}]
  %s11 = inlined_call_operand.vmem [shape: f32[1,128], index: 11, kind: input, shape index: {}]
  %s12 = inlined_call_operand.vmem [shape: f32[1,128], index: 12, kind: input, shape index: {}]
  %s13 = inlined_call_operand.vmem [shape: f32[1,128], index: 13, kind: input, shape index: {}]
  %s14 = inlined_call_operand.vmem [shape: f32[1,128], index: 14, kind: input, shape index: {}]
  %s15 = inlined_call_operand.vmem [shape: f32[1,128], index: 15, kind: input, shape index: {}]
  %s16 = inlined_call_operand.vmem [shape: f32[1,128], index: 16, kind: input, shape index: {}]
  %s17 = inlined_call_operand.vmem [shape: f32[1,128], index: 17, kind: input, shape index: {}]
  %s18 = inlined_call_operand.vmem [shape: f32[1,128], index: 18, kind: input, shape index: {}]
  %s19 = inlined_call_operand.vmem [shape: f32[1,128], index: 19, kind: input, shape index: {}]
  %s20 = inlined_call_operand.vmem [shape: f32[1,128], index: 20, kind: input, shape index: {}]
  %s21 = inlined_call_operand.hbm [shape: f32[8,128], index: 21, kind: output, shape index: {}]
  %s22 = sld [smem:[#allocation0]]
  $region138: #{autoencoder_forward.1} parent=0
    _
  %s24 = ssub.s32 1, %s22
  %s25 = scalar_select 0, %s24, %s22
  $region1: #{autoencoder_forward.1} parent=0
    #allocation2 [shape = 'u8[4096]{0}', space=vmem, size = 0x1000, scoped, tag = 'input window, operand 0, single buffered']
    #allocation3 [shape = 's32[1]{0}', space=sflag, size = 0x4, scoped, tag = 'scoped memory for autoencoder_forward.1']
    #allocation4 [shape = 's32[1]{0}', space=sflag, size = 0x4, scoped, tag = 'scoped memory for autoencoder_forward.1']
    #allocation5 [shape = 'u8[8192]{0}', space=vmem, size = 0x2000, scoped, tag = 'input window, operand 1, single buffered']
    #allocation6 [shape = 's32[1]{0}', space=sflag, size = 0x4, scoped, tag = 'scoped memory for autoencoder_forward.1']
    #allocation7 [shape = 'u8[32768]{0}', space=vmem, size = 0x8000, scoped, tag = 'input window, operand 2, single buffered']
    #allocation8 [shape = 'u8[32768]{0}', space=vmem, size = 0x8000, scoped, tag = 'input window, operand 3, single buffered']
    #allocation9 [shape = 's32[1]{0}', space=sflag, size = 0x4, scoped, tag = 'scoped memory for autoencoder_forward.1']
    #allocation10 [shape = 'u8[32768]{0}', space=vmem, size = 0x8000, scoped, tag = 'input window, operand 4, single buffered']
    #allocation11 [shape = 'u8[32768]{0}', space=vmem, size = 0x8000, scoped, tag = 'input window, operand 5, single buffered']
    #allocation12 [shape = 's32[1]{0}', space=sflag, size = 0x4, scoped, tag = 'scoped memory for autoencoder_forward.1']
    #allocation13 [shape = 'u8[32768]{0}', space=vmem, size = 0x8000, scoped, tag = 'input window, operand 6, single buffered']
    #allocation14 [shape = 'u8[32768]{0}', space=vmem, size = 0x8000, scoped, tag = 'input window, operand 7, single buffered']
    #allocation15 [shape = 's32[1]{0}', space=sflag, size = 0x4, scoped, tag = 'scoped memory for autoencoder_forward.1']
    #allocation16 [shape = 'u8[32768]{0}', space=vmem, size = 0x8000, scoped, tag = 'input window, operand 8, single buffered']
    #allocation17 [shape = 'u8[32768]{0}', space=vmem, size = 0x8000, scoped, tag = 'input window, operand 9, single buffered']
    #allocation18 [shape = 's32[1]{0}', space=sflag, size = 0x4, scoped, tag = 'scoped memory for autoencoder_forward.1']
    #allocation19 [shape = 'u8[32768]{0}', space=vmem, size = 0x8000, scoped, tag = 'input window, operand 10, single buffered']
    #allocation20 [shape = 'u8[4096]{0}', space=vmem, size = 0x1000, scoped, tag = 'output window, operand 0, single buffered']
    %26 = vsyncpa [#allocation3], 0
    %27 = vsyncpa [#allocation6], 0
    %28 = vsyncpa [#allocation9], 0
    %29 = vsyncpa [#allocation12], 0
    %30 = vsyncpa [#allocation15], 0
    %31 = vsyncpa [#allocation18], 0
    %32 = vsyncpa [#allocation4], 0
    // Predicated region
    $region2: #{autoencoder_forward.1} parent=1 // pred_check
      _
    $region3: #{autoencoder_forward.1} parent=1 // pred_check_branch
      %34 = sbr.rel (0) target = $region5
    $region4: #{autoencoder_forward.1} parent=1 // pred_region
      %36 = vsyncadd [#allocation3], 0
      %s38 = sshll.u32 %s0, 4
      %s39 = int_to_ptr.hbm [resolvable:$true] %s38
      %s40 = sshll.u32 [#allocation2], 4
      %s41 = int_to_ptr.vmem [resolvable:$true] %s40
      %43 = dma.hbm_to_vmem [thread:$0]  %s39, 128, %s41, [#allocation3]
    $region5: #{autoencoder_forward.1} parent=1 // pred_fallthru
      _
    // Predicated region
    $region6: #{autoencoder_forward.1} parent=1 // pred_check
      _
    $region7: #{autoencoder_forward.1} parent=1 // pred_check_branch
      %45 = sbr.rel (0) target = $region9
    $region8: #{autoencoder_forward.1} parent=1 // pred_region
      %47 = vsyncadd [#allocation6], 0
      %s48 = sshll.u32 %s1, 4
      %s49 = int_to_ptr.hbm [resolvable:$true] %s48
      %s50 = sshll.u32 [#allocation5], 4
      %s51 = int_to_ptr.vmem [resolvable:$true] %s50
      %56 = dma.hbm_to_vmem [thread:$0]  %s49, 256, %s51, [#allocation6], 64, 64, 4
    $region9: #{autoencoder_forward.1} parent=1 // pred_fallthru
      _
    // Predicated region
    $region10: #{autoencoder_forward.1} parent=1 // pred_check
      _
    $region11: #{autoencoder_forward.1} parent=1 // pred_check_branch
      %58 = sbr.rel (0) target = $region13
    $region12: #{autoencoder_forward.1} parent=1 // pred_region
      %60 = vsyncadd [#allocation6], 0
      %s61 = sshll.u32 %s2, 4
      %s62 = int_to_ptr.hbm [resolvable:$true] %s61
      %s63 = sshll.u32 [#allocation7], 4
      %s64 = int_to_ptr.vmem [resolvable:$true] %s63
      %69 = dma.hbm_to_vmem [thread:$0]  %s62, 1024, %s64, [#allocation6], 64, 64, 4
    $region13: #{autoencoder_forward.1} parent=1 // pred_fallthru
      _
    // Predicated region
    $region14: #{autoencoder_forward.1} parent=1 // pred_check
      _
    $region15: #{autoencoder_forward.1} parent=1 // pred_check_branch
      %71 = sbr.rel (0) target = $region17
    $region16: #{autoencoder_forward.1} parent=1 // pred_region
      %73 = vsyncadd [#allocation9], 0
      %s74 = sshll.u32 %s3, 4
      %s75 = int_to_ptr.hbm [resolvable:$true] %s74
      %s76 = sshll.u32 [#allocation8], 4
      %s77 = int_to_ptr.vmem [resolvable:$true] %s76
      %82 = dma.hbm_to_vmem [thread:$0]  %s75, 1024, %s77, [#allocation9], 64, 64, 4
    $region17: #{autoencoder_forward.1} parent=1 // pred_fallthru
      _
    // Predicated region
    $region18: #{autoencoder_forward.1} parent=1 // pred_check
      _
    $region19: #{autoencoder_forward.1} parent=1 // pred_check_branch
      %84 = sbr.rel (0) target = $region21
    $region20: #{autoencoder_forward.1} parent=1 // pred_region
      %86 = vsyncadd [#allocation9], 0
      %s87 = sshll.u32 %s4, 4
      %s88 = int_to_ptr.hbm [resolvable:$true] %s87
      %s89 = sshll.u32 [#allocation10], 4
      %s90 = int_to_ptr.vmem [resolvable:$true] %s89
      %95 = dma.hbm_to_vmem [thread:$0]  %s88, 1024, %s90, [#allocation9], 64, 64, 4
    $region21: #{autoencoder_forward.1} parent=1 // pred_fallthru
      _
    // Predicated region
    $region22: #{autoencoder_forward.1} parent=1 // pred_check
      _
    $region23: #{autoencoder_forward.1} parent=1 // pred_check_branch
      %97 = sbr.rel (0) target = $region25
    $region24: #{autoencoder_forward.1} parent=1 // pred_region
      %99 = vsyncadd [#allocation12], 0
      %s100 = sshll.u32 %s5, 4
      %s101 = int_to_ptr.hbm [resolvable:$true] %s100
      %s102 = sshll.u32 [#allocation11], 4
      %s103 = int_to_ptr.vmem [resolvable:$true] %s102
      %108 = dma.hbm_to_vmem [thread:$0]  %s101, 1024, %s103, [#allocation12], 64, 64, 4
    $region25: #{autoencoder_forward.1} parent=1 // pred_fallthru
      _
    // Predicated region
    $region26: #{autoencoder_forward.1} parent=1 // pred_check
      _
    $region27: #{autoencoder_forward.1} parent=1 // pred_check_branch
      %110 = sbr.rel (0) target = $region29
    $region28: #{autoencoder_forward.1} parent=1 // pred_region
      %112 = vsyncadd [#allocation12], 0
      %s113 = sshll.u32 %s6, 4
      %s114 = int_to_ptr.hbm [resolvable:$true] %s113
      %s115 = sshll.u32 [#allocation13], 4
      %s116 = int_to_ptr.vmem [resolvable:$true] %s115
      %121 = dma.hbm_to_vmem [thread:$0]  %s114, 1024, %s116, [#allocation12], 64, 64, 4
    $region29: #{autoencoder_forward.1} parent=1 // pred_fallthru
      _
    // Predicated region
    $region30: #{autoencoder_forward.1} parent=1 // pred_check
      _
    $region31: #{autoencoder_forward.1} parent=1 // pred_check_branch
      %123 = sbr.rel (0) target = $region33
    $region32: #{autoencoder_forward.1} parent=1 // pred_region
      %125 = vsyncadd [#allocation15], 0
      %s126 = sshll.u32 %s7, 4
      %s127 = int_to_ptr.hbm [resolvable:$true] %s126
      %s128 = sshll.u32 [#allocation14], 4
      %s129 = int_to_ptr.vmem [resolvable:$true] %s128
      %134 = dma.hbm_to_vmem [thread:$0]  %s127, 1024, %s129, [#allocation15], 64, 64, 4
    $region33: #{autoencoder_forward.1} parent=1 // pred_fallthru
      _
    // Predicated region
    $region34: #{autoencoder_forward.1} parent=1 // pred_check
      _
    $region35: #{autoencoder_forward.1} parent=1 // pred_check_branch
      %136 = sbr.rel (0) target = $region37
    $region36: #{autoencoder_forward.1} parent=1 // pred_region
      %138 = vsyncadd [#allocation15], 0
      %s139 = sshll.u32 %s8, 4
      %s140 = int_to_ptr.hbm [resolvable:$true] %s139
      %s141 = sshll.u32 [#allocation16], 4
      %s142 = int_to_ptr.vmem [resolvable:$true] %s141
      %147 = dma.hbm_to_vmem [thread:$0]  %s140, 1024, %s142, [#allocation15], 64, 64, 4
    $region37: #{autoencoder_forward.1} parent=1 // pred_fallthru
      _
    // Predicated region
    $region38: #{autoencoder_forward.1} parent=1 // pred_check
      _
    $region39: #{autoencoder_forward.1} parent=1 // pred_check_branch
      %149 = sbr.rel (0) target = $region41
    $region40: #{autoencoder_forward.1} parent=1 // pred_region
      %151 = vsyncadd [#allocation18], 0
      %s152 = sshll.u32 %s9, 4
      %s153 = int_to_ptr.hbm [resolvable:$true] %s152
      %s154 = sshll.u32 [#allocation17], 4
      %s155 = int_to_ptr.vmem [resolvable:$true] %s154
      %160 = dma.hbm_to_vmem [thread:$0]  %s153, 1024, %s155, [#allocation18], 64, 64, 4
    $region41: #{autoencoder_forward.1} parent=1 // pred_fallthru
      _
    // Predicated region
    $region42: #{autoencoder_forward.1} parent=1 // pred_check
      _
    $region43: #{autoencoder_forward.1} parent=1 // pred_check_branch
      %162 = sbr.rel (0) target = $region45
    $region44: #{autoencoder_forward.1} parent=1 // pred_region
      %164 = vsyncadd [#allocation18], 0
      %s165 = sshll.u32 %s10, 4
      %s166 = int_to_ptr.hbm [resolvable:$true] %s165
      %s167 = sshll.u32 [#allocation19], 4
      %s168 = int_to_ptr.vmem [resolvable:$true] %s167
      %173 = dma.hbm_to_vmem [thread:$0]  %s166, 1024, %s168, [#allocation18], 64, 64, 4
    $region45: #{autoencoder_forward.1} parent=1 // pred_fallthru
      _
    // Predicated region
    $region46: #{autoencoder_forward.1} parent=1 // pred_check
      _
    $region47: #{autoencoder_forward.1} parent=1 // pred_check_branch
      %175 = sbr.rel (0) target = $region49
    $region48: #{autoencoder_forward.1} parent=1 // pred_region
      _
    $region49: #{autoencoder_forward.1} parent=1 // pred_fallthru
      _
    // Predicated region
    $region50: #{autoencoder_forward.1} parent=1 // pred_check
      _
    $region51: #{autoencoder_forward.1} parent=1 // pred_check_branch
      %177 = sbr.rel (0) target = $region53
    $region52: #{autoencoder_forward.1} parent=1 // pred_region
      _
    $region53: #{autoencoder_forward.1} parent=1 // pred_fallthru
      _
    // Predicated region
    $region54: #{autoencoder_forward.1} parent=1 // pred_check
      _
    $region55: #{autoencoder_forward.1} parent=1 // pred_check_branch
      %179 = sbr.rel (0) target = $region57
    $region56: #{autoencoder_forward.1} parent=1 // pred_region
      _
    $region57: #{autoencoder_forward.1} parent=1 // pred_fallthru
      _
    // Predicated region
    $region58: #{autoencoder_forward.1} parent=1 // pred_check
      _
    $region59: #{autoencoder_forward.1} parent=1 // pred_check_branch
      %181 = sbr.rel (0) target = $region61
    $region60: #{autoencoder_forward.1} parent=1 // pred_region
      _
    $region61: #{autoencoder_forward.1} parent=1 // pred_fallthru
      _
    // Predicated region
    $region62: #{autoencoder_forward.1} parent=1 // pred_check
      _
    $region63: #{autoencoder_forward.1} parent=1 // pred_check_branch
      %183 = sbr.rel (0) target = $region65
    $region64: #{autoencoder_forward.1} parent=1 // pred_region
      _
    $region65: #{autoencoder_forward.1} parent=1 // pred_fallthru
      _
    // Predicated region
    $region66: #{autoencoder_forward.1} parent=1 // pred_check
      _
    $region67: #{autoencoder_forward.1} parent=1 // pred_check_branch
      %185 = sbr.rel (0) target = $region69
    $region68: #{autoencoder_forward.1} parent=1 // pred_region
      _
    $region69: #{autoencoder_forward.1} parent=1 // pred_fallthru
      _
    // Predicated region
    $region70: #{autoencoder_forward.1} parent=1 // pred_check
      _
    $region71: #{autoencoder_forward.1} parent=1 // pred_check_branch
      %187 = sbr.rel (0) target = $region73
    $region72: #{autoencoder_forward.1} parent=1 // pred_region
      _
    $region73: #{autoencoder_forward.1} parent=1 // pred_fallthru
      _
    // Predicated region
    $region74: #{autoencoder_forward.1} parent=1 // pred_check
      _
    $region75: #{autoencoder_forward.1} parent=1 // pred_check_branch
      %189 = sbr.rel (0) target = $region77
    $region76: #{autoencoder_forward.1} parent=1 // pred_region
      _
    $region77: #{autoencoder_forward.1} parent=1 // pred_fallthru
      _
    // Predicated region
    $region78: #{autoencoder_forward.1} parent=1 // pred_check
      _
    $region79: #{autoencoder_forward.1} parent=1 // pred_check_branch
      %191 = sbr.rel (0) target = $region81
    $region80: #{autoencoder_forward.1} parent=1 // pred_region
      _
    $region81: #{autoencoder_forward.1} parent=1 // pred_fallthru
      _
    // Predicated region
    $region82: #{autoencoder_forward.1} parent=1 // pred_check
      _
    $region83: #{autoencoder_forward.1} parent=1 // pred_check_branch
      %193 = sbr.rel (0) target = $region85
    $region84: #{autoencoder_forward.1} parent=1 // pred_region
      _
    $region85: #{autoencoder_forward.1} parent=1 // pred_fallthru
      _
    // Predicated region
    $region86: #{autoencoder_forward.1} parent=1 // pred_check
      _
    $region87: #{autoencoder_forward.1} parent=1 // pred_check_branch
      %195 = sbr.rel (0) target = $region89
    $region88: #{autoencoder_forward.1} parent=1 // pred_region
      %197 = dma.done [#allocation3], 128
    $region89: #{autoencoder_forward.1} parent=1 // pred_fallthru
      _
    // Predicated region
    $region90: #{autoencoder_forward.1} parent=1 // pred_check
      _
    $region91: #{autoencoder_forward.1} parent=1 // pred_check_branch
      %199 = sbr.rel (0) target = $region93
    $region92: #{autoencoder_forward.1} parent=1 // pred_region
      %201 = dma.done [#allocation6], 256
    $region93: #{autoencoder_forward.1} parent=1 // pred_fallthru
      _
    // Predicated region
    $region94: #{autoencoder_forward.1} parent=1 // pred_check
      _
    $region95: #{autoencoder_forward.1} parent=1 // pred_check_branch
      %203 = sbr.rel (0) target = $region97
    $region96: #{autoencoder_forward.1} parent=1 // pred_region
      %205 = dma.done [#allocation6], 1024
    $region97: #{autoencoder_forward.1} parent=1 // pred_fallthru
      _
    // Predicated region
    $region98: #{autoencoder_forward.1} parent=1 // pred_check
      _
    $region99: #{autoencoder_forward.1} parent=1 // pred_check_branch
      %207 = sbr.rel (0) target = $region101
    $region100: #{autoencoder_forward.1} parent=1 // pred_region
      %209 = dma.done [#allocation9], 1024
    $region101: #{autoencoder_forward.1} parent=1 // pred_fallthru
      _
    // Predicated region
    $region102: #{autoencoder_forward.1} parent=1 // pred_check
      _
    $region103: #{autoencoder_forward.1} parent=1 // pred_check_branch
      %211 = sbr.rel (0) target = $region105
    $region104: #{autoencoder_forward.1} parent=1 // pred_region
      %213 = dma.done [#allocation9], 1024
    $region105: #{autoencoder_forward.1} parent=1 // pred_fallthru
      _
    // Predicated region
    $region106: #{autoencoder_forward.1} parent=1 // pred_check
      _
    $region107: #{autoencoder_forward.1} parent=1 // pred_check_branch
      %215 = sbr.rel (0) target = $region109
    $region108: #{autoencoder_forward.1} parent=1 // pred_region
      %217 = dma.done [#allocation12], 1024
    $region109: #{autoencoder_forward.1} parent=1 // pred_fallthru
      _
    // Predicated region
    $region110: #{autoencoder_forward.1} parent=1 // pred_check
      _
    $region111: #{autoencoder_forward.1} parent=1 // pred_check_branch
      %219 = sbr.rel (0) target = $region113
    $region112: #{autoencoder_forward.1} parent=1 // pred_region
      %221 = dma.done [#allocation12], 1024
    $region113: #{autoencoder_forward.1} parent=1 // pred_fallthru
      _
    // Predicated region
    $region114: #{autoencoder_forward.1} parent=1 // pred_check
      _
    $region115: #{autoencoder_forward.1} parent=1 // pred_check_branch
      %223 = sbr.rel (0) target = $region117
    $region116: #{autoencoder_forward.1} parent=1 // pred_region
      %225 = dma.done [#allocation15], 1024
    $region117: #{autoencoder_forward.1} parent=1 // pred_fallthru
      _
    // Predicated region
    $region118: #{autoencoder_forward.1} parent=1 // pred_check
      _
    $region119: #{autoencoder_forward.1} parent=1 // pred_check_branch
      %227 = sbr.rel (0) target = $region121
    $region120: #{autoencoder_forward.1} parent=1 // pred_region
      %229 = dma.done [#allocation15], 1024
    $region121: #{autoencoder_forward.1} parent=1 // pred_fallthru
      _
    // Predicated region
    $region122: #{autoencoder_forward.1} parent=1 // pred_check
      _
    $region123: #{autoencoder_forward.1} parent=1 // pred_check_branch
      %231 = sbr.rel (0) target = $region125
    $region124: #{autoencoder_forward.1} parent=1 // pred_region
      %233 = dma.done [#allocation18], 1024
    $region125: #{autoencoder_forward.1} parent=1 // pred_fallthru
      _
    // Predicated region
    $region126: #{autoencoder_forward.1} parent=1 // pred_check
      _
    $region127: #{autoencoder_forward.1} parent=1 // pred_check_branch
      %235 = sbr.rel (0) target = $region129
    $region128: #{autoencoder_forward.1} parent=1 // pred_region
      %237 = dma.done [#allocation18], 1024
    $region129: #{autoencoder_forward.1} parent=1 // pred_fallthru
      _
    %v239 = vld [vmem:[#allocation2] sm:$0xff]
    %v240 = vpack.c.bf16 %v239, %v239
    %v241 = vld [vmem:[#allocation5] sm:$0xf]
    %v242 = vld [vmem:[#allocation5 + $0x4] sm:$0xf]
    %v243 = vld [vmem:[#allocation5 + $0x8] sm:$0xf]
    %v244 = vld [vmem:[#allocation5 + $0xc] sm:$0x3]
    %v245 = vld [vmem:[%s11] sm:$0x1]
    %v247 = vperm.slane %v245, 0
    %v253 = vunpack.c.l.b16 %v241
    %v254 = vunpack.c.l.b16 %v242
    %v255 = vunpack.c.l.b16 %v243
    %v256 = vunpack.c.l.b16 %v244
    %v257 = vpack.c.b16 %v254, %v253
    %v258 = vpack.c.b16 %v256, %v255
    %vm260 = vcmask 228352
    %v262 = vsel %vm260, %v240, 0
    %vm264 = vcmask 1045504
    %v266 = vsel %vm264, %v258, 0
    %268 = vmatpush.bf16.msra.mxu0 0
    %269 = vmatpush.bf16.msra.mxu0 0
    %270 = vmatpush.bf16.msra.mxu0 0
    %271 = vmatpush.bf16.msra.mxu0 0
    %272 = vmatpush.bf16.msra.mxu0 0
    %273 = vmatpush.bf16.msra.mxu0 0
    %274 = vmatpush.bf16.msra.mxu0 %v266
    %275 = vmatpush.bf16.msra.mxu0 %v257
    %276 = vmatmul.bf16.gmra.mxu0 %v262
    %v277 = vpop.f32.mrf.mxu0
    %v278 = vadd.f32 %v247, %v277
    %v279 = vpop.f32.mrf.mxu0
    %280 = vdwg.mxu0
    %v281 = vmax.f32 %v278, 0.0
    %v282 = vpack.c.bf16 %v281, %v281
    %v283 = vld [vmem:[#allocation7] sm:$0xf]
    %v284 = vld [vmem:[#allocation7 + $0x4] sm:$0xf]
    %v285 = vld [vmem:[#allocation7 + $0x8] sm:$0xf]
    %v286 = vld [vmem:[#allocation7 + $0xc] sm:$0xf]
    %v287 = vld [vmem:[#allocation7 + $0x10] sm:$0xf]
    %v288 = vld [vmem:[#allocation7 + $0x14] sm:$0xf]
    %v289 = vld [vmem:[#allocation7 + $0x18] sm:$0xf]
    %v290 = vld [vmem:[#allocation7 + $0x1c] sm:$0xf]
    %v291 = vld [vmem:[#allocation7 + $0x20] sm:$0xf]
    %v292 = vld [vmem:[#allocation7 + $0x24] sm:$0xf]
    %v293 = vld [vmem:[#allocation7 + $0x28] sm:$0xf]
    %v294 = vld [vmem:[#allocation7 + $0x2c] sm:$0xf]
    %v295 = vld [vmem:[#allocation7 + $0x30] sm:$0xf]
    %v296 = vld [vmem:[#allocation7 + $0x34] sm:$0xf]
    %v297 = vld [vmem:[#allocation7 + $0x38] sm:$0xf]
    %v298 = vld [vmem:[#allocation7 + $0x3c] sm:$0xf]
    %v299 = vld [vmem:[%s12] sm:$0x1]
    %v301 = vperm.slane %v299, 0
    %v319 = vunpack.c.l.b16 %v283
    %v320 = vunpack.c.l.b16 %v284
    %v321 = vunpack.c.l.b16 %v285
    %v322 = vunpack.c.l.b16 %v286
    %v323 = vunpack.c.l.b16 %v287
    %v324 = vunpack.c.l.b16 %v288
    %v325 = vunpack.c.l.b16 %v289
    %v326 = vunpack.c.l.b16 %v290
    %v327 = vunpack.c.l.b16 %v291
    %v328 = vunpack.c.l.b16 %v292
    %v329 = vunpack.c.l.b16 %v293
    %v330 = vunpack.c.l.b16 %v294
    %v331 = vunpack.c.l.b16 %v295
    %v332 = vunpack.c.l.b16 %v296
    %v333 = vunpack.c.l.b16 %v297
    %v334 = vunpack.c.l.b16 %v298
    %v335 = vpack.c.b16 %v320, %v319
    %v336 = vpack.c.b16 %v322, %v321
    %v337 = vpack.c.b16 %v324, %v323
    %v338 = vpack.c.b16 %v326, %v325
    %v339 = vpack.c.b16 %v328, %v327
    %v340 = vpack.c.b16 %v330, %v329
    %v341 = vpack.c.b16 %v332, %v331
    %v342 = vpack.c.b16 %v334, %v333
    %351 = vmatpush.bf16.msra.mxu0 %v342
    %352 = vmatpush.bf16.msra.mxu0 %v341
    %353 = vmatpush.bf16.msra.mxu0 %v340
    %354 = vmatpush.bf16.msra.mxu0 %v339
    %355 = vmatpush.bf16.msra.mxu0 %v338
    %356 = vmatpush.bf16.msra.mxu0 %v337
    %357 = vmatpush.bf16.msra.mxu0 %v336
    %358 = vmatpush.bf16.msra.mxu0 %v335
    %359 = vmatmul.bf16.gmra.mxu0 %v282
    %v360 = vpop.f32.mrf.mxu0
    %v361 = vadd.f32 %v301, %v360
    %v362 = vpop.f32.mrf.mxu0
    %363 = vdwg.mxu0
    %v364 = vmax.f32 %v361, 0.0
    %v365 = vpack.c.bf16 %v364, %v364
    %v366 = vld [vmem:[#allocation8] sm:$0xf]
    %v367 = vld [vmem:[#allocation8 + $0x4] sm:$0xf]
    %v368 = vld [vmem:[#allocation8 + $0x8] sm:$0xf]
    %v369 = vld [vmem:[#allocation8 + $0xc] sm:$0xf]
    %v370 = vld [vmem:[#allocation8 + $0x10] sm:$0xf]
    %v371 = vld [vmem:[#allocation8 + $0x14] sm:$0xf]
    %v372 = vld [vmem:[#allocation8 + $0x18] sm:$0xf]
    %v373 = vld [vmem:[#allocation8 + $0x1c] sm:$0xf]
    %v374 = vld [vmem:[#allocation8 + $0x20] sm:$0xf]
    %v375 = vld [vmem:[#allocation8 + $0x24] sm:$0xf]
    %v376 = vld [vmem:[#allocation8 + $0x28] sm:$0xf]
    %v377 = vld [vmem:[#allocation8 + $0x2c] sm:$0xf]
    %v378 = vld [vmem:[#allocation8 + $0x30] sm:$0xf]
    %v379 = vld [vmem:[#allocation8 + $0x34] sm:$0xf]
    %v380 = vld [vmem:[#allocation8 + $0x38] sm:$0xf]
    %v381 = vld [vmem:[#allocation8 + $0x3c] sm:$0xf]
    %v382 = vld [vmem:[%s13] sm:$0x1]
    %v384 = vperm.slane %v382, 0
    %v402 = vunpack.c.l.b16 %v366
    %v403 = vunpack.c.l.b16 %v367
    %v404 = vunpack.c.l.b16 %v368
    %v405 = vunpack.c.l.b16 %v369
    %v406 = vunpack.c.l.b16 %v370
    %v407 = vunpack.c.l.b16 %v371
    %v408 = vunpack.c.l.b16 %v372
    %v409 = vunpack.c.l.b16 %v373
    %v410 = vunpack.c.l.b16 %v374
    %v411 = vunpack.c.l.b16 %v375
    %v412 = vunpack.c.l.b16 %v376
    %v413 = vunpack.c.l.b16 %v377
    %v414 = vunpack.c.l.b16 %v378
    %v415 = vunpack.c.l.b16 %v379
    %v416 = vunpack.c.l.b16 %v380
    %v417 = vunpack.c.l.b16 %v381
    %v418 = vpack.c.b16 %v403, %v402
    %v419 = vpack.c.b16 %v405, %v404
    %v420 = vpack.c.b16 %v407, %v406
    %v421 = vpack.c.b16 %v409, %v408
    %v422 = vpack.c.b16 %v411, %v410
    %v423 = vpack.c.b16 %v413, %v412
    %v424 = vpack.c.b16 %v415, %v414
    %v425 = vpack.c.b16 %v417, %v416
    %434 = vmatpush.bf16.msra.mxu0 %v425
    %435 = vmatpush.bf16.msra.mxu0 %v424
    %436 = vmatpush.bf16.msra.mxu0 %v423
    %437 = vmatpush.bf16.msra.mxu0 %v422
    %438 = vmatpush.bf16.msra.mxu0 %v421
    %439 = vmatpush.bf16.msra.mxu0 %v420
    %440 = vmatpush.bf16.msra.mxu0 %v419
    %441 = vmatpush.bf16.msra.mxu0 %v418
    %442 = vmatmul.bf16.gmra.mxu0 %v365
    %v443 = vpop.f32.mrf.mxu0
    %v444 = vadd.f32 %v384, %v443
    %v445 = vpop.f32.mrf.mxu0
    %446 = vdwg.mxu0
    %v447 = vmax.f32 %v444, 0.0
    %v448 = vpack.c.bf16 %v447, %v447
    %v449 = vld [vmem:[#allocation10] sm:$0xf]
    %v450 = vld [vmem:[#allocation10 + $0x4] sm:$0xf]
    %v451 = vld [vmem:[#allocation10 + $0x8] sm:$0xf]
    %v452 = vld [vmem:[#allocation10 + $0xc] sm:$0xf]
    %v453 = vld [vmem:[#allocation10 + $0x10] sm:$0xf]
    %v454 = vld [vmem:[#allocation10 + $0x14] sm:$0xf]
    %v455 = vld [vmem:[#allocation10 + $0x18] sm:$0xf]
    %v456 = vld [vmem:[#allocation10 + $0x1c] sm:$0xf]
    %v457 = vld [vmem:[#allocation10 + $0x20] sm:$0xf]
    %v458 = vld [vmem:[#allocation10 + $0x24] sm:$0xf]
    %v459 = vld [vmem:[#allocation10 + $0x28] sm:$0xf]
    %v460 = vld [vmem:[#allocation10 + $0x2c] sm:$0xf]
    %v461 = vld [vmem:[#allocation10 + $0x30] sm:$0xf]
    %v462 = vld [vmem:[#allocation10 + $0x34] sm:$0xf]
    %v463 = vld [vmem:[#allocation10 + $0x38] sm:$0xf]
    %v464 = vld [vmem:[#allocation10 + $0x3c] sm:$0xf]
    %v465 = vld [vmem:[%s14] sm:$0x1]
    %v467 = vperm.slane %v465, 0
    %v485 = vunpack.c.l.b16 %v449
    %v486 = vunpack.c.l.b16 %v450
    %v487 = vunpack.c.l.b16 %v451
    %v488 = vunpack.c.l.b16 %v452
    %v489 = vunpack.c.l.b16 %v453
    %v490 = vunpack.c.l.b16 %v454
    %v491 = vunpack.c.l.b16 %v455
    %v492 = vunpack.c.l.b16 %v456
    %v493 = vunpack.c.l.b16 %v457
    %v494 = vunpack.c.l.b16 %v458
    %v495 = vunpack.c.l.b16 %v459
    %v496 = vunpack.c.l.b16 %v460
    %v497 = vunpack.c.l.b16 %v461
    %v498 = vunpack.c.l.b16 %v462
    %v499 = vunpack.c.l.b16 %v463
    %v500 = vunpack.c.l.b16 %v464
    %v501 = vpack.c.b16 %v486, %v485
    %v502 = vpack.c.b16 %v488, %v487
    %v503 = vpack.c.b16 %v490, %v489
    %v504 = vpack.c.b16 %v492, %v491
    %v505 = vpack.c.b16 %v494, %v493
    %v506 = vpack.c.b16 %v496, %v495
    %v507 = vpack.c.b16 %v498, %v497
    %v508 = vpack.c.b16 %v500, %v499
    %517 = vmatpush.bf16.msra.mxu0 %v508
    %518 = vmatpush.bf16.msra.mxu0 %v507
    %519 = vmatpush.bf16.msra.mxu0 %v506
    %520 = vmatpush.bf16.msra.mxu0 %v505
    %521 = vmatpush.bf16.msra.mxu0 %v504
    %522 = vmatpush.bf16.msra.mxu0 %v503
    %523 = vmatpush.bf16.msra.mxu0 %v502
    %524 = vmatpush.bf16.msra.mxu0 %v501
    %525 = vmatmul.bf16.gmra.mxu0 %v448
    %v526 = vpop.f32.mrf.mxu0
    %v527 = vadd.f32 %v467, %v526
    %v528 = vpop.f32.mrf.mxu0
    %529 = vdwg.mxu0
    %v530 = vmax.f32 %v527, 0.0
    %v531 = vpack.c.bf16 %v530, %v530
    %v532 = vld [vmem:[#allocation11] sm:$0xf]
    %v533 = vld [vmem:[#allocation11 + $0x4] sm:$0xf]
    %v534 = vld [vmem:[#allocation11 + $0x8] sm:$0xf]
    %v535 = vld [vmem:[#allocation11 + $0xc] sm:$0xf]
    %v536 = vld [vmem:[#allocation11 + $0x10] sm:$0xf]
    %v537 = vld [vmem:[#allocation11 + $0x14] sm:$0xf]
    %v538 = vld [vmem:[#allocation11 + $0x18] sm:$0xf]
    %v539 = vld [vmem:[#allocation11 + $0x1c] sm:$0xf]
    %v540 = vld [vmem:[#allocation11 + $0x20] sm:$0xf]
    %v541 = vld [vmem:[#allocation11 + $0x24] sm:$0xf]
    %v542 = vld [vmem:[#allocation11 + $0x28] sm:$0xf]
    %v543 = vld [vmem:[#allocation11 + $0x2c] sm:$0xf]
    %v544 = vld [vmem:[#allocation11 + $0x30] sm:$0xf]
    %v545 = vld [vmem:[#allocation11 + $0x34] sm:$0xf]
    %v546 = vld [vmem:[#allocation11 + $0x38] sm:$0xf]
    %v547 = vld [vmem:[#allocation11 + $0x3c] sm:$0xf]
    %v548 = vld [vmem:[%s15] sm:$0x1]
    %v550 = vperm.slane %v548, 0
    %v568 = vunpack.c.l.b16 %v532
    %v569 = vunpack.c.l.b16 %v533
    %v570 = vunpack.c.l.b16 %v534
    %v571 = vunpack.c.l.b16 %v535
    %v572 = vunpack.c.l.b16 %v536
    %v573 = vunpack.c.l.b16 %v537
    %v574 = vunpack.c.l.b16 %v538
    %v575 = vunpack.c.l.b16 %v539
    %v576 = vunpack.c.l.b16 %v540
    %v577 = vunpack.c.l.b16 %v541
    %v578 = vunpack.c.l.b16 %v542
    %v579 = vunpack.c.l.b16 %v543
    %v580 = vunpack.c.l.b16 %v544
    %v581 = vunpack.c.l.b16 %v545
    %v582 = vunpack.c.l.b16 %v546
    %v583 = vunpack.c.l.b16 %v547
    %v584 = vpack.c.b16 %v569, %v568
    %v585 = vpack.c.b16 %v571, %v570
    %v586 = vpack.c.b16 %v573, %v572
    %v587 = vpack.c.b16 %v575, %v574
    %v588 = vpack.c.b16 %v577, %v576
    %v589 = vpack.c.b16 %v579, %v578
    %v590 = vpack.c.b16 %v581, %v580
    %v591 = vpack.c.b16 %v583, %v582
    %600 = vmatpush.bf16.msra.mxu0 %v591
    %601 = vmatpush.bf16.msra.mxu0 %v590
    %602 = vmatpush.bf16.msra.mxu0 %v589
    %603 = vmatpush.bf16.msra.mxu0 %v588
    %604 = vmatpush.bf16.msra.mxu0 %v587
    %605 = vmatpush.bf16.msra.mxu0 %v586
    %606 = vmatpush.bf16.msra.mxu0 %v585
    %607 = vmatpush.bf16.msra.mxu0 %v584
    %608 = vmatmul.bf16.gmra.mxu0 %v531
    %v609 = vpop.f32.mrf.mxu0
    %v610 = vadd.f32 %v550, %v609
    %v611 = vpop.f32.mrf.mxu0
    %612 = vdwg.mxu0
    %v613 = vpack.c.bf16 %v610, %v610
    %v614 = vld [vmem:[#allocation13] sm:$0xf]
    %v615 = vld [vmem:[#allocation13 + $0x4] sm:$0xf]
    %v616 = vld [vmem:[#allocation13 + $0x8] sm:$0xf]
    %v617 = vld [vmem:[#allocation13 + $0xc] sm:$0xf]
    %v618 = vld [vmem:[#allocation13 + $0x10] sm:$0xf]
    %v619 = vld [vmem:[#allocation13 + $0x14] sm:$0xf]
    %v620 = vld [vmem:[#allocation13 + $0x18] sm:$0xf]
    %v621 = vld [vmem:[#allocation13 + $0x1c] sm:$0xf]
    %v622 = vld [vmem:[#allocation13 + $0x20] sm:$0xf]
    %v623 = vld [vmem:[#allocation13 + $0x24] sm:$0xf]
    %v624 = vld [vmem:[#allocation13 + $0x28] sm:$0xf]
    %v625 = vld [vmem:[#allocation13 + $0x2c] sm:$0xf]
    %v626 = vld [vmem:[#allocation13 + $0x30] sm:$0xf]
    %v627 = vld [vmem:[#allocation13 + $0x34] sm:$0xf]
    %v628 = vld [vmem:[#allocation13 + $0x38] sm:$0xf]
    %v629 = vld [vmem:[#allocation13 + $0x3c] sm:$0xf]
    %v630 = vld [vmem:[%s16] sm:$0x1]
    %v632 = vperm.slane %v630, 0
    %v650 = vunpack.c.l.b16 %v614
    %v651 = vunpack.c.l.b16 %v615
    %v652 = vunpack.c.l.b16 %v616
    %v653 = vunpack.c.l.b16 %v617
    %v654 = vunpack.c.l.b16 %v618
    %v655 = vunpack.c.l.b16 %v619
    %v656 = vunpack.c.l.b16 %v620
    %v657 = vunpack.c.l.b16 %v621
    %v658 = vunpack.c.l.b16 %v622
    %v659 = vunpack.c.l.b16 %v623
    %v660 = vunpack.c.l.b16 %v624
    %v661 = vunpack.c.l.b16 %v625
    %v662 = vunpack.c.l.b16 %v626
    %v663 = vunpack.c.l.b16 %v627
    %v664 = vunpack.c.l.b16 %v628
    %v665 = vunpack.c.l.b16 %v629
    %v666 = vpack.c.b16 %v651, %v650
    %v667 = vpack.c.b16 %v653, %v652
    %v668 = vpack.c.b16 %v655, %v654
    %v669 = vpack.c.b16 %v657, %v656
    %v670 = vpack.c.b16 %v659, %v658
    %v671 = vpack.c.b16 %v661, %v660
    %v672 = vpack.c.b16 %v663, %v662
    %v673 = vpack.c.b16 %v665, %v664
    %682 = vmatpush.bf16.msra.mxu0 %v673
    %683 = vmatpush.bf16.msra.mxu0 %v672
    %684 = vmatpush.bf16.msra.mxu0 %v671
    %685 = vmatpush.bf16.msra.mxu0 %v670
    %686 = vmatpush.bf16.msra.mxu0 %v669
    %687 = vmatpush.bf16.msra.mxu0 %v668
    %688 = vmatpush.bf16.msra.mxu0 %v667
    %689 = vmatpush.bf16.msra.mxu0 %v666
    %690 = vmatmul.bf16.gmra.mxu0 %v613
    %v691 = vpop.f32.mrf.mxu0
    %v692 = vadd.f32 %v632, %v691
    %v693 = vpop.f32.mrf.mxu0
    %694 = vdwg.mxu0
    %v695 = vmax.f32 %v692, 0.0
    %v696 = vpack.c.bf16 %v695, %v695
    %v697 = vld [vmem:[#allocation14] sm:$0xf]
    %v698 = vld [vmem:[#allocation14 + $0x4] sm:$0xf]
    %v699 = vld [vmem:[#allocation14 + $0x8] sm:$0xf]
    %v700 = vld [vmem:[#allocation14 + $0xc] sm:$0xf]
    %v701 = vld [vmem:[#allocation14 + $0x10] sm:$0xf]
    %v702 = vld [vmem:[#allocation14 + $0x14] sm:$0xf]
    %v703 = vld [vmem:[#allocation14 + $0x18] sm:$0xf]
    %v704 = vld [vmem:[#allocation14 + $0x1c] sm:$0xf]
    %v705 = vld [vmem:[#allocation14 + $0x20] sm:$0xf]
    %v706 = vld [vmem:[#allocation14 + $0x24] sm:$0xf]
    %v707 = vld [vmem:[#allocation14 + $0x28] sm:$0xf]
    %v708 = vld [vmem:[#allocation14 + $0x2c] sm:$0xf]
    %v709 = vld [vmem:[#allocation14 + $0x30] sm:$0xf]
    %v710 = vld [vmem:[#allocation14 + $0x34] sm:$0xf]
    %v711 = vld [vmem:[#allocation14 + $0x38] sm:$0xf]
    %v712 = vld [vmem:[#allocation14 + $0x3c] sm:$0xf]
    %v713 = vld [vmem:[%s17] sm:$0x1]
    %v715 = vperm.slane %v713, 0
    %v733 = vunpack.c.l.b16 %v697
    %v734 = vunpack.c.l.b16 %v698
    %v735 = vunpack.c.l.b16 %v699
    %v736 = vunpack.c.l.b16 %v700
    %v737 = vunpack.c.l.b16 %v701
    %v738 = vunpack.c.l.b16 %v702
    %v739 = vunpack.c.l.b16 %v703
    %v740 = vunpack.c.l.b16 %v704
    %v741 = vunpack.c.l.b16 %v705
    %v742 = vunpack.c.l.b16 %v706
    %v743 = vunpack.c.l.b16 %v707
    %v744 = vunpack.c.l.b16 %v708
    %v745 = vunpack.c.l.b16 %v709
    %v746 = vunpack.c.l.b16 %v710
    %v747 = vunpack.c.l.b16 %v711
    %v748 = vunpack.c.l.b16 %v712
    %v749 = vpack.c.b16 %v734, %v733
    %v750 = vpack.c.b16 %v736, %v735
    %v751 = vpack.c.b16 %v738, %v737
    %v752 = vpack.c.b16 %v740, %v739
    %v753 = vpack.c.b16 %v742, %v741
    %v754 = vpack.c.b16 %v744, %v743
    %v755 = vpack.c.b16 %v746, %v745
    %v756 = vpack.c.b16 %v748, %v747
    %765 = vmatpush.bf16.msra.mxu0 %v756
    %766 = vmatpush.bf16.msra.mxu0 %v755
    %767 = vmatpush.bf16.msra.mxu0 %v754
    %768 = vmatpush.bf16.msra.mxu0 %v753
    %769 = vmatpush.bf16.msra.mxu0 %v752
    %770 = vmatpush.bf16.msra.mxu0 %v751
    %771 = vmatpush.bf16.msra.mxu0 %v750
    %772 = vmatpush.bf16.msra.mxu0 %v749
    %773 = vmatmul.bf16.gmra.mxu0 %v696
    %v774 = vpop.f32.mrf.mxu0
    %v775 = vadd.f32 %v715, %v774
    %v776 = vpop.f32.mrf.mxu0
    %777 = vdwg.mxu0
    %v778 = vmax.f32 %v775, 0.0
    %v779 = vpack.c.bf16 %v778, %v778
    %v780 = vld [vmem:[#allocation16] sm:$0xf]
    %v781 = vld [vmem:[#allocation16 + $0x4] sm:$0xf]
    %v782 = vld [vmem:[#allocation16 + $0x8] sm:$0xf]
    %v783 = vld [vmem:[#allocation16 + $0xc] sm:$0xf]
    %v784 = vld [vmem:[#allocation16 + $0x10] sm:$0xf]
    %v785 = vld [vmem:[#allocation16 + $0x14] sm:$0xf]
    %v786 = vld [vmem:[#allocation16 + $0x18] sm:$0xf]
    %v787 = vld [vmem:[#allocation16 + $0x1c] sm:$0xf]
    %v788 = vld [vmem:[#allocation16 + $0x20] sm:$0xf]
    %v789 = vld [vmem:[#allocation16 + $0x24] sm:$0xf]
    %v790 = vld [vmem:[#allocation16 + $0x28] sm:$0xf]
    %v791 = vld [vmem:[#allocation16 + $0x2c] sm:$0xf]
    %v792 = vld [vmem:[#allocation16 + $0x30] sm:$0xf]
    %v793 = vld [vmem:[#allocation16 + $0x34] sm:$0xf]
    %v794 = vld [vmem:[#allocation16 + $0x38] sm:$0xf]
    %v795 = vld [vmem:[#allocation16 + $0x3c] sm:$0xf]
    %v796 = vld [vmem:[%s18] sm:$0x1]
    %v798 = vperm.slane %v796, 0
    %v816 = vunpack.c.l.b16 %v780
    %v817 = vunpack.c.l.b16 %v781
    %v818 = vunpack.c.l.b16 %v782
    %v819 = vunpack.c.l.b16 %v783
    %v820 = vunpack.c.l.b16 %v784
    %v821 = vunpack.c.l.b16 %v785
    %v822 = vunpack.c.l.b16 %v786
    %v823 = vunpack.c.l.b16 %v787
    %v824 = vunpack.c.l.b16 %v788
    %v825 = vunpack.c.l.b16 %v789
    %v826 = vunpack.c.l.b16 %v790
    %v827 = vunpack.c.l.b16 %v791
    %v828 = vunpack.c.l.b16 %v792
    %v829 = vunpack.c.l.b16 %v793
    %v830 = vunpack.c.l.b16 %v794
    %v831 = vunpack.c.l.b16 %v795
    %v832 = vpack.c.b16 %v817, %v816
    %v833 = vpack.c.b16 %v819, %v818
    %v834 = vpack.c.b16 %v821, %v820
    %v835 = vpack.c.b16 %v823, %v822
    %v836 = vpack.c.b16 %v825, %v824
    %v837 = vpack.c.b16 %v827, %v826
    %v838 = vpack.c.b16 %v829, %v828
    %v839 = vpack.c.b16 %v831, %v830
    %848 = vmatpush.bf16.msra.mxu0 %v839
    %849 = vmatpush.bf16.msra.mxu0 %v838
    %850 = vmatpush.bf16.msra.mxu0 %v837
    %851 = vmatpush.bf16.msra.mxu0 %v836
    %852 = vmatpush.bf16.msra.mxu0 %v835
    %853 = vmatpush.bf16.msra.mxu0 %v834
    %854 = vmatpush.bf16.msra.mxu0 %v833
    %855 = vmatpush.bf16.msra.mxu0 %v832
    %856 = vmatmul.bf16.gmra.mxu0 %v779
    %v857 = vpop.f32.mrf.mxu0
    %v858 = vadd.f32 %v798, %v857
    %v859 = vpop.f32.mrf.mxu0
    %860 = vdwg.mxu0
    %v861 = vmax.f32 %v858, 0.0
    %v862 = vpack.c.bf16 %v861, %v861
    %v863 = vld [vmem:[#allocation17] sm:$0xf]
    %v864 = vld [vmem:[#allocation17 + $0x4] sm:$0xf]
    %v865 = vld [vmem:[#allocation17 + $0x8] sm:$0xf]
    %v866 = vld [vmem:[#allocation17 + $0xc] sm:$0xf]
    %v867 = vld [vmem:[#allocation17 + $0x10] sm:$0xf]
    %v868 = vld [vmem:[#allocation17 + $0x14] sm:$0xf]
    %v869 = vld [vmem:[#allocation17 + $0x18] sm:$0xf]
    %v870 = vld [vmem:[#allocation17 + $0x1c] sm:$0xf]
    %v871 = vld [vmem:[#allocation17 + $0x20] sm:$0xf]
    %v872 = vld [vmem:[#allocation17 + $0x24] sm:$0xf]
    %v873 = vld [vmem:[#allocation17 + $0x28] sm:$0xf]
    %v874 = vld [vmem:[#allocation17 + $0x2c] sm:$0xf]
    %v875 = vld [vmem:[#allocation17 + $0x30] sm:$0xf]
    %v876 = vld [vmem:[#allocation17 + $0x34] sm:$0xf]
    %v877 = vld [vmem:[#allocation17 + $0x38] sm:$0xf]
    %v878 = vld [vmem:[#allocation17 + $0x3c] sm:$0xf]
    %v879 = vld [vmem:[%s19] sm:$0x1]
    %v881 = vperm.slane %v879, 0
    %v899 = vunpack.c.l.b16 %v863
    %v900 = vunpack.c.l.b16 %v864
    %v901 = vunpack.c.l.b16 %v865
    %v902 = vunpack.c.l.b16 %v866
    %v903 = vunpack.c.l.b16 %v867
    %v904 = vunpack.c.l.b16 %v868
    %v905 = vunpack.c.l.b16 %v869
    %v906 = vunpack.c.l.b16 %v870
    %v907 = vunpack.c.l.b16 %v871
    %v908 = vunpack.c.l.b16 %v872
    %v909 = vunpack.c.l.b16 %v873
    %v910 = vunpack.c.l.b16 %v874
    %v911 = vunpack.c.l.b16 %v875
    %v912 = vunpack.c.l.b16 %v876
    %v913 = vunpack.c.l.b16 %v877
    %v914 = vunpack.c.l.b16 %v878
    %v915 = vpack.c.b16 %v900, %v899
    %v916 = vpack.c.b16 %v902, %v901
    %v917 = vpack.c.b16 %v904, %v903
    %v918 = vpack.c.b16 %v906, %v905
    %v919 = vpack.c.b16 %v908, %v907
    %v920 = vpack.c.b16 %v910, %v909
    %v921 = vpack.c.b16 %v912, %v911
    %v922 = vpack.c.b16 %v914, %v913
    %931 = vmatpush.bf16.msra.mxu0 %v922
    %932 = vmatpush.bf16.msra.mxu0 %v921
    %933 = vmatpush.bf16.msra.mxu0 %v920
    %934 = vmatpush.bf16.msra.mxu0 %v919
    %935 = vmatpush.bf16.msra.mxu0 %v918
    %936 = vmatpush.bf16.msra.mxu0 %v917
    %937 = vmatpush.bf16.msra.mxu0 %v916
    %938 = vmatpush.bf16.msra.mxu0 %v915
    %939 = vmatmul.bf16.gmra.mxu0 %v862
    %v940 = vpop.f32.mrf.mxu0
    %v941 = vadd.f32 %v881, %v940
    %v942 = vpop.f32.mrf.mxu0
    %943 = vdwg.mxu0
    %v944 = vmax.f32 %v941, 0.0
    %v945 = vpack.c.bf16 %v944, %v944
    %v946 = vld [vmem:[#allocation19] sm:$0xf]
    %v947 = vld [vmem:[#allocation19 + $0x4] sm:$0xf]
    %v948 = vld [vmem:[#allocation19 + $0x8] sm:$0xf]
    %v949 = vld [vmem:[#allocation19 + $0xc] sm:$0xf]
    %v950 = vld [vmem:[#allocation19 + $0x10] sm:$0xf]
    %v951 = vld [vmem:[#allocation19 + $0x14] sm:$0xf]
    %v952 = vld [vmem:[#allocation19 + $0x18] sm:$0xf]
    %v953 = vld [vmem:[#allocation19 + $0x1c] sm:$0xf]
    %v954 = vld [vmem:[#allocation19 + $0x20] sm:$0xf]
    %v955 = vld [vmem:[#allocation19 + $0x24] sm:$0xf]
    %v956 = vld [vmem:[#allocation19 + $0x28] sm:$0xf]
    %v957 = vld [vmem:[#allocation19 + $0x2c] sm:$0xf]
    %v958 = vld [vmem:[#allocation19 + $0x30] sm:$0xf]
    %v959 = vld [vmem:[#allocation19 + $0x34] sm:$0xf]
    %v960 = vld [vmem:[#allocation19 + $0x38] sm:$0xf]
    %v961 = vld [vmem:[#allocation19 + $0x3c] sm:$0xf]
    %v962 = vld [vmem:[%s20] sm:$0x1]
    %v964 = vperm.slane %v962, 0
    %v982 = vunpack.c.l.b16 %v946
    %v983 = vunpack.c.l.b16 %v947
    %v984 = vunpack.c.l.b16 %v948
    %v985 = vunpack.c.l.b16 %v949
    %v986 = vunpack.c.l.b16 %v950
    %v987 = vunpack.c.l.b16 %v951
    %v988 = vunpack.c.l.b16 %v952
    %v989 = vunpack.c.l.b16 %v953
    %v990 = vunpack.c.l.b16 %v954
    %v991 = vunpack.c.l.b16 %v955
    %v992 = vunpack.c.l.b16 %v956
    %v993 = vunpack.c.l.b16 %v957
    %v994 = vunpack.c.l.b16 %v958
    %v995 = vunpack.c.l.b16 %v959
    %v996 = vunpack.c.l.b16 %v960
    %v997 = vunpack.c.l.b16 %v961
    %v998 = vpack.c.b16 %v983, %v982
    %v999 = vpack.c.b16 %v985, %v984
    %v1000 = vpack.c.b16 %v987, %v986
    %v1001 = vpack.c.b16 %v989, %v988
    %v1002 = vpack.c.b16 %v991, %v990
    %v1003 = vpack.c.b16 %v993, %v992
    %v1004 = vpack.c.b16 %v995, %v994
    %v1005 = vpack.c.b16 %v997, %v996
    %1014 = vmatpush.bf16.msra.mxu0 %v1005
    %1015 = vmatpush.bf16.msra.mxu0 %v1004
    %1016 = vmatpush.bf16.msra.mxu0 %v1003
    %1017 = vmatpush.bf16.msra.mxu0 %v1002
    %1018 = vmatpush.bf16.msra.mxu0 %v1001
    %1019 = vmatpush.bf16.msra.mxu0 %v1000
    %1020 = vmatpush.bf16.msra.mxu0 %v999
    %1021 = vmatpush.bf16.msra.mxu0 %v998
    %1022 = vmatmul.bf16.gmra.mxu0 %v945
    %v1023 = vpop.f32.mrf.mxu0
    %v1024 = vadd.f32 %v964, %v1023
    %v1025 = vpop.f32.mrf.mxu0
    %1026 = vdwg.mxu0
    %v1027 = vxor.u32 %v1024, 2147483648
    %v1028 = vmul.f32 %v1027, 1.442695
    %v1029 = vpow.pop %v1028
    %v1030 = vadd.f32 %v1029, 1.0
    %v1031 = vrcp.pop %v1030
    %v1032 = vmul.f32 %v1030, %v1031
    %v1033 = vsub.f32 1.0, %v1032
    %v1034 = vmul.f32 %v1031, %v1033
    %v1035 = vadd.f32 %v1031, %v1034
    %vm1036 = vweird.f32 %v1030
    %vm1037 = vweird.f32 %v1031
    %vm1038 = vmor %vm1036, %vm1037
    %v1039 = vsel %vm1038, %v1031, %v1035
    %v1040 = vand.u32 2147483647, %v1030
    %vm1041 = vcmp.eq.f32.partialorder %v1040, 8.507059e+37
    %v1042 = vand.u32 %v1030, 2147483648
    %v1043 = vor.u32 1.1754944e-38, %v1042
    %v1044 = vsel %vm1041, %v1043, %v1039
    %v1045 = vmul.f32 1.0, %v1044
    %1046 = vst [vmem:[#allocation20] sm:$0xff] %v1045
    // Predicated region
    $region130: #{autoencoder_forward.1} parent=1 // pred_check
      _
    $region131: #{autoencoder_forward.1} parent=1 // pred_check_branch
      %1048 = sbr.rel (0) target = $region133
    $region132: #{autoencoder_forward.1} parent=1 // pred_region
      %1050 = vsyncadd [#allocation4], 0
      %s1052 = sshll.u32 [#allocation20], 4
      %s1053 = int_to_ptr.vmem [resolvable:$true] %s1052
      %s1054 = sshll.u32 %s21, 4
      %s1055 = int_to_ptr.hbm [resolvable:$true] %s1054
      %1057 = dma.vmem_to_hbm [thread:$0]  %s1053, 128, %s1055, [#allocation4]
    $region133: #{autoencoder_forward.1} parent=1 // pred_fallthru
      _
    // Predicated region
    $region134: #{autoencoder_forward.1} parent=1 // pred_check
      _
    $region135: #{autoencoder_forward.1} parent=1 // pred_check_branch
      %1059 = sbr.rel (0) target = $region137
    $region136: #{autoencoder_forward.1} parent=1 // pred_region
      %1061 = dma.done [#allocation4], 128
    $region137: #{autoencoder_forward.1} parent=1 // pred_fallthru
      _
    %1062 = vsyncpa [#allocation3], 1
    %1063 = vsyncpa [#allocation6], 1
    %1064 = vsyncpa [#allocation9], 1
    %1065 = vsyncpa [#allocation12], 1
    %1066 = vsyncpa [#allocation15], 1
    %1067 = vsyncpa [#allocation18], 1
    %1068 = vsyncpa [#allocation4], 1

</llo_original>
